<compile_context>
chip_gen: v6e
topology: v6e:2x2x1
jax: 0.10.0
libtpu: 0.0.40
codegen_flags: <defaults>
</compile_context>

<pallas_src>
import functools

import jax
import jax.numpy as jnp
from jax.experimental import pallas as pl
from jax.experimental.pallas import tpu as pltpu


def _pcc_kernel(x_ref, y_ref, o_ref, acc_ref, *, n_true):
    """Streaming PCC: accumulate raw moments per sample, finalize on last tile."""
    j = pl.program_id(1)

    @pl.when(j == 0)
    def _init():
        acc_ref[...] = jnp.zeros_like(acc_ref)

    x = x_ref[0].astype(jnp.float32)          # (TR, C)
    y = y_ref[0].astype(jnp.float32)
    tr = x.shape[0]
    acc_rows = acc_ref.shape[1]
    groups = tr // acc_rows                   # static

    def fold(v):
        # Collapse vreg row-groups with pure elementwise (VALU) adds; the
        # reshape splits the sublane axis exactly at vreg granularity so it is
        # a layout no-op. No cross-lane (XLU) reduction in the hot loop.
        if groups > 1:
            return jnp.sum(v.reshape(groups, acc_rows, v.shape[-1]), axis=0)
        return v

    acc_ref[0] += fold(x)
    acc_ref[1] += fold(y)
    acc_ref[2] += fold(x * x)
    acc_ref[3] += fold(y * y)
    acc_ref[4] += fold(x * y)

    @pl.when(j == pl.num_programs(1) - 1)
    def _finalize():
        n = n_true
        # Single cross-lane collapse per sample (cheap: once per batch row).
        sx = jnp.sum(acc_ref[0])
        sy = jnp.sum(acc_ref[1])
        sxx = jnp.sum(acc_ref[2])
        syy = jnp.sum(acc_ref[3])
        sxy = jnp.sum(acc_ref[4])
        inv_n = 1.0 / n
        mx = sx * inv_n
        my = sy * inv_n
        # Unbiased variance (Bessel, divide by N-1) — torch.std default.
        var_x = (sxx - n * mx * mx) / (n - 1.0)
        var_y = (syy - n * my * my) / (n - 1.0)
        std_x = jnp.sqrt(jnp.maximum(var_x, 0.0))
        std_y = jnp.sqrt(jnp.maximum(var_y, 0.0))
        # mean((x-mx)*(y-my)) from raw moments.
        cov = (sxy - n * mx * my) * inv_n
        pcc_i = cov / ((std_x + 1e-4) * (std_y + 1e-4))
        o_ref[...] = jnp.broadcast_to(pcc_i, o_ref.shape).astype(o_ref.dtype)


def _choose_layout(n, tile_budget_bytes=2 * 1024 * 1024):
    """Pick lane width C (multiple of 128) and row-tile TR for (b, n) -> (b, R, C).

    Returns (C, R, TR, n_pad). The reshape is a pure view of the row-major
    data whenever n_pad == n; TR is a multiple of 8 (full sublane packing)
    whenever the shape allows it, and TR*C*4 bytes stays under the per-buffer
    byte budget so blocks are large enough to amortise per-grid-step overhead.
    """
    divisors = [c for c in (512, 256, 128) if n % c == 0]
    if divisors:
        # Prefer the largest C that still leaves >= 8 rows (full sublane use).
        packed = [c for c in divisors if n // c >= 8]
        c = max(packed) if packed else max(divisors)
        n_pad = n
    else:
        # Ragged tail (rare for NCHW inputs): zero-pad to a multiple of 128.
        c = 128
        n_pad = ((n + 127) // 128) * 128
    r = n_pad // c
    budget_rows = max(8, (tile_budget_bytes // (4 * c)) // 8 * 8)
    if r <= budget_rows:
        tr = r                      # single row-tile; full-dim block is legal
    else:
        tr = 0
        for t in range(8, budget_rows + 1, 8):
            if r % t == 0:
                tr = t
        if tr == 0:
            # No multiple-of-8 divisor within budget: pad rows so one exists.
            tr = budget_rows
            r = ((r + tr - 1) // tr) * tr
            n_pad = r * c
    return c, r, tr, n_pad


def pcc(input_arr, target_arr, reduction="mean"):
    """Pearson correlation metric matching the PyTorch PCC module forward."""
    b = input_arr.shape[0]
    x = input_arr.reshape(b, -1)
    y = target_arr.reshape(b, -1)
    n = x.shape[1]

    c, r, tr, n_pad = _choose_layout(n)
    if n_pad != n:
        # Zero padding leaves every raw moment unchanged; the true N is baked
        # into the finalization.
        # TODO(synk): replace with in-kernel tail masking to avoid the extra
        # HBM copy on the ragged path (only hit when n % 128 != 0).
        x = jnp.pad(x, ((0, 0), (0, n_pad - n)))
        y = jnp.pad(y, ((0, 0), (0, n_pad - n)))
    x = x.reshape(b, r, c)
    y = y.reshape(b, r, c)
    num_tiles = r // tr
    acc_rows = 8 if tr % 8 == 0 else tr

    kernel = functools.partial(_pcc_kernel, n_true=float(n))
    itemsize = jnp.dtype(x.dtype).itemsize

    out = pl.pallas_call(
        kernel,
        out_shape=jax.ShapeDtypeStruct((b, 1, 128), jnp.float32),
        grid=(b, num_tiles),
        in_specs=[
            pl.BlockSpec((1, tr, c), lambda i, j: (i, j, 0)),
            pl.BlockSpec((1, tr, c), lambda i, j: (i, j, 0)),
        ],
        out_specs=pl.BlockSpec((1, 1, 128), lambda i, j: (i, 0, 0)),
        scratch_shapes=[pltpu.VMEM((5, acc_rows, c), jnp.float32)],
        compiler_params=pltpu.CompilerParams(
            dimension_semantics=("parallel", "arbitrary"),
            vmem_limit_bytes=48 * 1024 * 1024,   # safe on v7x (64 MiB physical)
        ),
        cost_estimate=pl.CostEstimate(
            flops=8 * b * n_pad,
            transcendentals=4 * b,
            bytes_accessed=2 * b * n_pad * itemsize + b * 128 * 4,
        ),
    )(x, y)

    per_sample = out[:, 0, 0]                    # (b,)
    if reduction == "mean":
        return jnp.mean(per_sample)
    if reduction == "sum":
        return jnp.sum(per_sample)
    return per_sample


def _pcc_ref(x, y, reduction="mean"):
    """Plain-JAX reference mirroring the PyTorch forward exactly."""
    b = x.shape[0]
    xf = x.reshape(b, -1).astype(jnp.float32)
    yf = y.reshape(b, -1).astype(jnp.float32)
    mean_x = jnp.mean(xf, axis=1, keepdims=True)
    mean_y = jnp.mean(yf, axis=1, keepdims=True)
    std_x = jnp.std(xf, axis=1, keepdims=True, ddof=1)
    std_y = jnp.std(yf, axis=1, keepdims=True, ddof=1)
    vx = (xf - mean_x) / (std_x + 0.0001)
    vy = (yf - mean_y) / (std_y + 0.0001)
    per_sample = jnp.mean(vx * vy, axis=1)
    if reduction == "mean":
        return jnp.mean(per_sample)
    if reduction == "sum":
        return jnp.sum(per_sample)
    return per_sample


if __name__ == "__main__":
    key = jax.random.PRNGKey(0)
    k1, k2 = jax.random.split(key)
    # NCHW inputs, small shapes: batch=2, channels=4, spatial=16x16
    x = jax.random.normal(k1, (2, 4, 16, 16), dtype=jnp.float32)
    # Make target correlated with input so PCC is nontrivial.
    y = 0.7 * x + 0.3 * jax.random.normal(k2, (2, 4, 16, 16), dtype=jnp.float32)

    out = pcc(x, y, reduction="mean")
    jax.block_until_ready(out)

    ref = _pcc_ref(x, y, reduction="mean")
    assert jnp.allclose(out, ref, atol=1e-4, rtol=1e-4), (out, ref)
    print("KERNEL_OK")
</pallas_src>

<mosaic_0001>
module attributes {stable_mosaic.version = 11 : i64} {
  func.func @_pcc_kernel(%arg0: i32, %arg1: i32, %arg2: memref<1x8x128xf32, #tpu.memory_space<vmem>>, %arg3: memref<1x8x128xf32, #tpu.memory_space<vmem>>, %arg4: memref<1x1x128xf32, #tpu.memory_space<vmem>>, %arg5: memref<5x8x128xf32, #tpu.memory_space<vmem>>) attributes {dimension_semantics = [#tpu.dimension_semantics<parallel>, #tpu.dimension_semantics<arbitrary>], iteration_bounds = array<i64: 2, 1>, scalar_prefetch = 0 : i64, scratch_operands = 1 : i64, tpu.core_type = #tpu.core_type<tc>, window_params = [{transform_indices = @transform_0, window_bounds = array<i64: 1, 8, 128>}, {transform_indices = @transform_1, window_bounds = array<i64: 1, 8, 128>}, {transform_indices = @transform_2, window_bounds = array<i64: 1, 1, 128>}]} {
    %c0_i32 = arith.constant 0 : i32
    %0 = arith.cmpi eq, %arg1, %c0_i32 : i32
    %1 = arith.extui %0 : i1 to i32
    %c0_i32_0 = arith.constant 0 : i32
    %2 = arith.cmpi ne, %1, %c0_i32_0 : i32
    scf.if %2 {
      %cst = arith.constant 0.000000e+00 : f32
      %43 = vector.broadcast %cst : f32 to vector<5x8x128xf32>
      %c0_34 = arith.constant 0 : index
      %c0_35 = arith.constant 0 : index
      %c0_36 = arith.constant 0 : index
      %44 = vector.load %arg5[%c0_34, %c0_35, %c0_36] : memref<5x8x128xf32, #tpu.memory_space<vmem>>, vector<5x8x128xf32>
      tpu.vector_store %arg5[%c0_34, %c0_35, %c0_36], %43 {strides = array<i32>} : memref<5x8x128xf32, #tpu.memory_space<vmem>>, vector<5x8x128xf32>,
    } else {
    }
    %c0 = arith.constant 0 : index
    %c0_1 = arith.constant 0 : index
    %c0_2 = arith.constant 0 : index
    %3 = vector.load %arg2[%c0, %c0_1, %c0_2] : memref<1x8x128xf32, #tpu.memory_space<vmem>>, vector<1x8x128xf32>
    %4 = vector.shape_cast %3 : vector<1x8x128xf32> to vector<8x128xf32>
    %c0_3 = arith.constant 0 : index
    %c0_4 = arith.constant 0 : index
    %c0_5 = arith.constant 0 : index
    %5 = vector.load %arg3[%c0_3, %c0_4, %c0_5] : memref<1x8x128xf32, #tpu.memory_space<vmem>>, vector<1x8x128xf32>
    %6 = vector.shape_cast %5 : vector<1x8x128xf32> to vector<8x128xf32>
    %c0_6 = arith.constant 0 : index
    %c0_7 = arith.constant 0 : index
    %c0_8 = arith.constant 0 : index
    %7 = vector.load %arg5[%c0_6, %c0_7, %c0_8] : memref<5x8x128xf32, #tpu.memory_space<vmem>>, vector<1x8x128xf32>
    %8 = vector.shape_cast %7 : vector<1x8x128xf32> to vector<8x128xf32>
    %9 = arith.addf %8, %4 : vector<8x128xf32>
    %c0_9 = arith.constant 0 : index
    %c0_10 = arith.constant 0 : index
    %c0_11 = arith.constant 0 : index
    %10 = vector.load %arg5[%c0_9, %c0_10, %c0_11] : memref<5x8x128xf32, #tpu.memory_space<vmem>>, vector<1x8x128xf32>
    %11 = vector.shape_cast %10 : vector<1x8x128xf32> to vector<8x128xf32>
    %12 = vector.shape_cast %9 : vector<8x128xf32> to vector<1x8x128xf32>
    tpu.vector_store %arg5[%c0_9, %c0_10, %c0_11], %12 {strides = array<i32>} : memref<5x8x128xf32, #tpu.memory_space<vmem>>, vector<1x8x128xf32>,
    %c1 = arith.constant 1 : index
    %c0_12 = arith.constant 0 : index
    %c0_13 = arith.constant 0 : index
    %13 = vector.load %arg5[%c1, %c0_12, %c0_13] : memref<5x8x128xf32, #tpu.memory_space<vmem>>, vector<1x8x128xf32>
    %14 = vector.shape_cast %13 : vector<1x8x128xf32> to vector<8x128xf32>
    %15 = arith.addf %14, %6 : vector<8x128xf32>
    %c1_14 = arith.constant 1 : index
    %c0_15 = arith.constant 0 : index
    %c0_16 = arith.constant 0 : index
    %16 = vector.load %arg5[%c1_14, %c0_15, %c0_16] : memref<5x8x128xf32, #tpu.memory_space<vmem>>, vector<1x8x128xf32>
    %17 = vector.shape_cast %16 : vector<1x8x128xf32> to vector<8x128xf32>
    %18 = vector.shape_cast %15 : vector<8x128xf32> to vector<1x8x128xf32>
    tpu.vector_store %arg5[%c1_14, %c0_15, %c0_16], %18 {strides = array<i32>} : memref<5x8x128xf32, #tpu.memory_space<vmem>>, vector<1x8x128xf32>,
    %c2 = arith.constant 2 : index
    %c0_17 = arith.constant 0 : index
    %c0_18 = arith.constant 0 : index
    %19 = vector.load %arg5[%c2, %c0_17, %c0_18] : memref<5x8x128xf32, #tpu.memory_space<vmem>>, vector<1x8x128xf32>
    %20 = vector.shape_cast %19 : vector<1x8x128xf32> to vector<8x128xf32>
    %21 = arith.mulf %4, %4 : vector<8x128xf32>
    %22 = arith.addf %20, %21 : vector<8x128xf32>
    %c2_19 = arith.constant 2 : index
    %c0_20 = arith.constant 0 : index
    %c0_21 = arith.constant 0 : index
    %23 = vector.load %arg5[%c2_19, %c0_20, %c0_21] : memref<5x8x128xf32, #tpu.memory_space<vmem>>, vector<1x8x128xf32>
    %24 = vector.shape_cast %23 : vector<1x8x128xf32> to vector<8x128xf32>
    %25 = vector.shape_cast %22 : vector<8x128xf32> to vector<1x8x128xf32>
    tpu.vector_store %arg5[%c2_19, %c0_20, %c0_21], %25 {strides = array<i32>} : memref<5x8x128xf32, #tpu.memory_space<vmem>>, vector<1x8x128xf32>,
    %c3 = arith.constant 3 : index
    %c0_22 = arith.constant 0 : index
    %c0_23 = arith.constant 0 : index
    %26 = vector.load %arg5[%c3, %c0_22, %c0_23] : memref<5x8x128xf32, #tpu.memory_space<vmem>>, vector<1x8x128xf32>
    %27 = vector.shape_cast %26 : vector<1x8x128xf32> to vector<8x128xf32>
    %28 = arith.mulf %6, %6 : vector<8x128xf32>
    %29 = arith.addf %27, %28 : vector<8x128xf32>
    %c3_24 = arith.constant 3 : index
    %c0_25 = arith.constant 0 : index
    %c0_26 = arith.constant 0 : index
    %30 = vector.load %arg5[%c3_24, %c0_25, %c0_26] : memref<5x8x128xf32, #tpu.memory_space<vmem>>, vector<1x8x128xf32>
    %31 = vector.shape_cast %30 : vector<1x8x128xf32> to vector<8x128xf32>
    %32 = vector.shape_cast %29 : vector<8x128xf32> to vector<1x8x128xf32>
    tpu.vector_store %arg5[%c3_24, %c0_25, %c0_26], %32 {strides = array<i32>} : memref<5x8x128xf32, #tpu.memory_space<vmem>>, vector<1x8x128xf32>,
    %c4 = arith.constant 4 : index
    %c0_27 = arith.constant 0 : index
    %c0_28 = arith.constant 0 : index
    %33 = vector.load %arg5[%c4, %c0_27, %c0_28] : memref<5x8x128xf32, #tpu.memory_space<vmem>>, vector<1x8x128xf32>
    %34 = vector.shape_cast %33 : vector<1x8x128xf32> to vector<8x128xf32>
    %35 = arith.mulf %4, %6 : vector<8x128xf32>
    %36 = arith.addf %34, %35 : vector<8x128xf32>
    %c4_29 = arith.constant 4 : index
    %c0_30 = arith.constant 0 : index
    %c0_31 = arith.constant 0 : index
    %37 = vector.load %arg5[%c4_29, %c0_30, %c0_31] : memref<5x8x128xf32, #tpu.memory_space<vmem>>, vector<1x8x128xf32>
    %38 = vector.shape_cast %37 : vector<1x8x128xf32> to vector<8x128xf32>
    %39 = vector.shape_cast %36 : vector<8x128xf32> to vector<1x8x128xf32>
    tpu.vector_store %arg5[%c4_29, %c0_30, %c0_31], %39 {strides = array<i32>} : memref<5x8x128xf32, #tpu.memory_space<vmem>>, vector<1x8x128xf32>,
    %c0_i32_32 = arith.constant 0 : i32
    %40 = arith.cmpi eq, %arg1, %c0_i32_32 : i32
    %41 = arith.extui %40 : i1 to i32
    %c0_i32_33 = arith.constant 0 : i32
    %42 = arith.cmpi ne, %41, %c0_i32_33 : i32
    scf.if %42 {
      %c0_34 = arith.constant 0 : index
      %c0_35 = arith.constant 0 : index
      %c0_36 = arith.constant 0 : index
      %43 = vector.load %arg5[%c0_34, %c0_35, %c0_36] : memref<5x8x128xf32, #tpu.memory_space<vmem>>, vector<1x8x128xf32>
      %44 = vector.shape_cast %43 : vector<1x8x128xf32> to vector<8x128xf32>
      %45 = vector.shape_cast %44 : vector<8x128xf32> to vector<1x8x128xf32>
      %cst = arith.constant dense<0.000000e+00> : vector<1xf32>
      %46 = vector.multi_reduction <add>, %45, %cst [1, 2] : vector<1x8x128xf32> to vector<1xf32>
      %47 = vector.shape_cast %46 : vector<1xf32> to vector<1x1x1xf32>
      %48 = vector.extract %47[0, 0, 0] : f32 from vector<1x1x1xf32>
      %c1_37 = arith.constant 1 : index
      %c0_38 = arith.constant 0 : index
      %c0_39 = arith.constant 0 : index
      %49 = vector.load %arg5[%c1_37, %c0_38, %c0_39] : memref<5x8x128xf32, #tpu.memory_space<vmem>>, vector<1x8x128xf32>
      %50 = vector.shape_cast %49 : vector<1x8x128xf32> to vector<8x128xf32>
      %51 = vector.shape_cast %50 : vector<8x128xf32> to vector<1x8x128xf32>
      %cst_40 = arith.constant dense<0.000000e+00> : vector<1xf32>
      %52 = vector.multi_reduction <add>, %51, %cst_40 [1, 2] : vector<1x8x128xf32> to vector<1xf32>
      %53 = vector.shape_cast %52 : vector<1xf32> to vector<1x1x1xf32>
      %54 = vector.extract %53[0, 0, 0] : f32 from vector<1x1x1xf32>
      %c2_41 = arith.constant 2 : index
      %c0_42 = arith.constant 0 : index
      %c0_43 = arith.constant 0 : index
      %55 = vector.load %arg5[%c2_41, %c0_42, %c0_43] : memref<5x8x128xf32, #tpu.memory_space<vmem>>, vector<1x8x128xf32>
      %56 = vector.shape_cast %55 : vector<1x8x128xf32> to vector<8x128xf32>
      %57 = vector.shape_cast %56 : vector<8x128xf32> to vector<1x8x128xf32>
      %cst_44 = arith.constant dense<0.000000e+00> : vector<1xf32>
      %58 = vector.multi_reduction <add>, %57, %cst_44 [1, 2] : vector<1x8x128xf32> to vector<1xf32>
      %59 = vector.shape_cast %58 : vector<1xf32> to vector<1x1x1xf32>
      %60 = vector.extract %59[0, 0, 0] : f32 from vector<1x1x1xf32>
      %c3_45 = arith.constant 3 : index
      %c0_46 = arith.constant 0 : index
      %c0_47 = arith.constant 0 : index
      %61 = vector.load %arg5[%c3_45, %c0_46, %c0_47] : memref<5x8x128xf32, #tpu.memory_space<vmem>>, vector<1x8x128xf32>
      %62 = vector.shape_cast %61 : vector<1x8x128xf32> to vector<8x128xf32>
      %63 = vector.shape_cast %62 : vector<8x128xf32> to vector<1x8x128xf32>
      %cst_48 = arith.constant dense<0.000000e+00> : vector<1xf32>
      %64 = vector.multi_reduction <add>, %63, %cst_48 [1, 2] : vector<1x8x128xf32> to vector<1xf32>
      %65 = vector.shape_cast %64 : vector<1xf32> to vector<1x1x1xf32>
      %66 = vector.extract %65[0, 0, 0] : f32 from vector<1x1x1xf32>
      %c4_49 = arith.constant 4 : index
      %c0_50 = arith.constant 0 : index
      %c0_51 = arith.constant 0 : index
      %67 = vector.load %arg5[%c4_49, %c0_50, %c0_51] : memref<5x8x128xf32, #tpu.memory_space<vmem>>, vector<1x8x128xf32>
      %68 = vector.shape_cast %67 : vector<1x8x128xf32> to vector<8x128xf32>
      %69 = vector.shape_cast %68 : vector<8x128xf32> to vector<1x8x128xf32>
      %cst_52 = arith.constant dense<0.000000e+00> : vector<1xf32>
      %70 = vector.multi_reduction <add>, %69, %cst_52 [1, 2] : vector<1x8x128xf32> to vector<1xf32>
      %71 = vector.shape_cast %70 : vector<1xf32> to vector<1x1x1xf32>
      %72 = vector.extract %71[0, 0, 0] : f32 from vector<1x1x1xf32>
      %cst_53 = arith.constant 9.765625E-4 : f32
      %73 = arith.mulf %48, %cst_53 : f32
      %cst_54 = arith.constant 9.765625E-4 : f32
      %74 = arith.mulf %54, %cst_54 : f32
      %cst_55 = arith.constant 1.024000e+03 : f32
      %75 = arith.mulf %cst_55, %73 : f32
      %76 = arith.mulf %75, %73 : f32
      %77 = arith.subf %60, %76 : f32
      %cst_56 = arith.constant 1.023000e+03 : f32
      %78 = arith.divf %77, %cst_56 : f32
      %cst_57 = arith.constant 1.024000e+03 : f32
      %79 = arith.mulf %cst_57, %74 : f32
      %80 = arith.mulf %79, %74 : f32
      %81 = arith.subf %66, %80 : f32
      %cst_58 = arith.constant 1.023000e+03 : f32
      %82 = arith.divf %81, %cst_58 : f32
      %cst_59 = arith.constant 0.000000e+00 : f32
      %83 = arith.maximumf %78, %cst_59 : f32
      %84 = math.sqrt %83 : f32
      %cst_60 = arith.constant 0.000000e+00 : f32
      %85 = arith.maximumf %82, %cst_60 : f32
      %86 = math.sqrt %85 : f32
      %cst_61 = arith.constant 1.024000e+03 : f32
      %87 = arith.mulf %cst_61, %73 : f32
      %88 = arith.mulf %87, %74 : f32
      %89 = arith.subf %72, %88 : f32
      %cst_62 = arith.constant 9.765625E-4 : f32
      %90 = arith.mulf %89, %cst_62 : f32
      %cst_63 = arith.constant 9.99999974E-5 : f32
      %91 = arith.addf %84, %cst_63 : f32
      %cst_64 = arith.constant 9.99999974E-5 : f32
      %92 = arith.addf %86, %cst_64 : f32
      %93 = arith.mulf %91, %92 : f32
      %94 = arith.divf %90, %93 : f32
      %95 = vector.broadcast %94 : f32 to vector<1x1x128xf32>
      %c0_65 = arith.constant 0 : index
      %c0_66 = arith.constant 0 : index
      %c0_67 = arith.constant 0 : index
      %96 = vector.load %arg4[%c0_65, %c0_66, %c0_67] : memref<1x1x128xf32, #tpu.memory_space<vmem>>, vector<1x1x128xf32>
      tpu.vector_store %arg4[%c0_65, %c0_66, %c0_67], %95 {strides = array<i32>} : memref<1x1x128xf32, #tpu.memory_space<vmem>>, vector<1x1x128xf32>,
    } else {
    }
    return
  }
  func.func @transform_0(%arg0: i32, %arg1: i32) -> (i32, i32, i32) {
    %c0_i32 = arith.constant 0 : i32
    %c0_i32_0 = arith.constant 0 : i32
    return %arg0, %arg1, %c0_i32 : i32, i32, i32
  }
  func.func @transform_1(%arg0: i32, %arg1: i32) -> (i32, i32, i32) {
    %c0_i32 = arith.constant 0 : i32
    %c0_i32_0 = arith.constant 0 : i32
    return %arg0, %arg1, %c0_i32 : i32, i32, i32
  }
  func.func @transform_2(%arg0: i32, %arg1: i32) -> (i32, i32, i32) {
    %c0_i32 = arith.constant 0 : i32
    %c0_i32_0 = arith.constant 0 : i32
    %c0_i32_1 = arith.constant 0 : i32
    return %arg0, %c0_i32, %c0_i32_0 : i32, i32, i32
  }
}

</mosaic_0001>

<llo_original>
// kernel: tpu_custom_call.1
$region0: #{tpu_custom_call.1}
  #allocation0 [shape = 'u32[]', space=smem, size = 0x4, offset = 0x4, fixed_abs, tag = 'smem constant byte address 0x4 - core index']
  #allocation1 [shape = 'u32[144,128]{1,0:T(1,128)}', space=vmem, size = 0x12000, scoped, tag = 'internal scratch']
  #allocation2 [shape = 'f32[5,8,128]{2,1,0:T(8,128)}', space=vmem, size = 0x5000, scoped, tag = 'scratch operand']
  %s0 = inlined_call_operand.hbm [shape: f32[2,8,128], index: 0, kind: input, shape index: {}]
  %s1 = inlined_call_operand.hbm [shape: f32[2,8,128], index: 1, kind: input, shape index: {}]
  %s2 = inlined_call_operand.hbm [shape: f32[2,1,128], index: 2, kind: output, shape index: {}]
  %s3 = sld [smem:[#allocation0]]
  $region57: #{tpu_custom_call.1} parent=0
    _
  %s5 = ssub.s32 1, %s3
  %s6 = scalar_select 0, %s5, %s3
  $region1: #{tpu_custom_call.1} parent=0
    #allocation3 [shape = 'u8[8192]{0}', space=vmem, size = 0x2000, scoped, tag = 'input window, operand 0']
    #allocation4 [shape = 's32[2]{0}', space=sflag, size = 0x8, scoped, tag = 'scoped memory for tpu_custom_call.1']
    #allocation5 [shape = 's32[2]{0}', space=sflag, size = 0x8, scoped, tag = 'scoped memory for tpu_custom_call.1']
    #allocation6 [shape = 'u8[8192]{0}', space=vmem, size = 0x2000, scoped, tag = 'input window, operand 1']
    #allocation7 [shape = 's32[2]{0}', space=sflag, size = 0x8, scoped, tag = 'scoped memory for tpu_custom_call.1']
    #allocation8 [shape = 'u8[1024]{0}', space=vmem, size = 0x400, scoped, tag = 'output window, operand 0']
    %7 = vsyncpa [#allocation4], 0
    %s8 = scalar_lea.sflag [#allocation4], 1
    %9 = vsyncpa %s8, 0
    %10 = vsyncpa [#allocation7], 0
    %s11 = scalar_lea.sflag [#allocation7], 1
    %12 = vsyncpa %s11, 0
    %13 = vsyncpa [#allocation5], 0
    %s14 = scalar_lea.sflag [#allocation5], 1
    %15 = vsyncpa %s14, 0
    loop: start=0, step=1, limit=4
    $region2: #{tpu_custom_call.1} parent=1 // loop_pre_header
      _
    $region3: #{tpu_custom_call.1} parent=1 // loop_header
      %s17 = sphi 0, %s21
      %p18 = scmp.ge.s32.totalorder %s17, 4
      %s24 = sphi 0, %s36
      %s25 = sphi 0, %s32
      %s26 = sphi 0, %s24
      %s27 = sphi 0, %s25
      %s28 = sphi 0, %s26
      %s29 = sphi 0, %s27
      %s41 = sphi 0, %s43
      %s44 = sphi 0, %s41
      %s45 = sphi 0, %s44
      %s61 = sphi 0, %s45
      %s69 = sphi 0, %s71
      %s72 = sphi 0, %s69
      %s73 = sphi 0, %s72
      %s89 = sphi 0, %s73
      %s95 = sphi 0, %s97
      %s98 = sphi 0, %s95
      %s99 = sphi 0, %s98
      %s115 = sphi 0, %s99
    $region4: #{tpu_custom_call.1} parent=1 // loop_header_branch
      %20 = sbr.rel (%p18) target = $region8
    $region5: #{tpu_custom_call.1} parent=1 // loop_body
      %s22 = ssub.s32 %s17, 1
      %s23 = ssub.s32 %s17, 2
      %s30 = sadd.s32 1, %s25
      %p31 = scmp.ge.s32.totalorder %s30, 1
      %s32 = scalar_select %p31, 0, %s30
      %s33 = sadd.s32 1, %s24
      %s34 = scalar_select %p31, %s33, %s24
      %p35 = scmp.ge.s32.totalorder %s34, 2
      %s36 = scalar_select %p35, 0, %s34
      %s37 = ssub.s32 %s24, %s36
      %s38 = ssub.s32 %s25, %s32
      %s39 = sor.u32 %s37, %s38
      %p40 = scmp.eq.s32.totalorder %s39, 0
      %s42 = sadd.s32 %s41, 1
      %s43 = scalar_select %p40, %s41, %s42
      %p46 = pneg %p40
      %p47 = scmp.eq.s32.totalorder %s17, 1
      %p48 = por %p46, %p47
      %p49 = scmp.ne.s32.totalorder %s41, %s44
      %p50 = scmp.eq.s32.totalorder %s17, 0
      %p51 = por %p49, %p50
      %p52 = scmp.ne.s32.totalorder %s41, %s44
      %p53 = scmp.eq.s32.totalorder %s22, 1
      %p54 = por %p52, %p53
      %p55 = scmp.ne.s32.totalorder %s44, %s45
      %p56 = scmp.eq.s32.totalorder %s22, 0
      %p57 = por %p55, %p56
      %p58 = scmp.ne.s32.totalorder %s44, %s45
      %p59 = scmp.eq.s32.totalorder %s23, 1
      %p60 = por %p58, %p59
      %p62 = scmp.ne.s32.totalorder %s45, %s61
      %p63 = scmp.eq.s32.totalorder %s23, 0
      %p64 = por %p62, %p63
      %s65 = ssub.s32 %s24, %s36
      %s66 = ssub.s32 %s25, %s32
      %s67 = sor.u32 %s65, %s66
      %p68 = scmp.eq.s32.totalorder %s67, 0
      %s70 = sadd.s32 %s69, 1
      %s71 = scalar_select %p68, %s69, %s70
      %p74 = pneg %p68
      %p75 = scmp.eq.s32.totalorder %s17, 1
      %p76 = por %p74, %p75
      %p77 = scmp.ne.s32.totalorder %s69, %s72
      %p78 = scmp.eq.s32.totalorder %s17, 0
      %p79 = por %p77, %p78
      %p80 = scmp.ne.s32.totalorder %s69, %s72
      %p81 = scmp.eq.s32.totalorder %s22, 1
      %p82 = por %p80, %p81
      %p83 = scmp.ne.s32.totalorder %s72, %s73
      %p84 = scmp.eq.s32.totalorder %s22, 0
      %p85 = por %p83, %p84
      %p86 = scmp.ne.s32.totalorder %s72, %s73
      %p87 = scmp.eq.s32.totalorder %s23, 1
      %p88 = por %p86, %p87
      %p90 = scmp.ne.s32.totalorder %s73, %s89
      %p91 = scmp.eq.s32.totalorder %s23, 0
      %p92 = por %p90, %p91
      %s93 = ssub.s32 %s24, %s36
      %p94 = scmp.eq.s32.totalorder %s93, 0
      %s96 = sadd.s32 %s95, 1
      %s97 = scalar_select %p94, %s95, %s96
      %p100 = pneg %p94
      %p101 = scmp.eq.s32.totalorder %s17, 1
      %p102 = por %p100, %p101
      %p103 = scmp.ne.s32.totalorder %s95, %s98
      %p104 = scmp.eq.s32.totalorder %s17, 0
      %p105 = por %p103, %p104
      %p106 = scmp.ne.s32.totalorder %s95, %s98
      %p107 = scmp.eq.s32.totalorder %s22, 1
      %p108 = por %p106, %p107
      %p109 = scmp.ne.s32.totalorder %s98, %s99
      %p110 = scmp.eq.s32.totalorder %s22, 0
      %p111 = por %p109, %p110
      %p112 = scmp.ne.s32.totalorder %s98, %s99
      %p113 = scmp.eq.s32.totalorder %s23, 1
      %p114 = por %p112, %p113
      %p116 = scmp.ne.s32.totalorder %s99, %s115
      %p117 = scmp.eq.s32.totalorder %s23, 0
      %p118 = por %p116, %p117
      %p119 = scmp.le.s32.totalorder 1, %s17
      %p120 = scmp.lt.s32.totalorder %s17, 3
      %p121 = pnand %p119, %p120
      %p122 = pneg %p121
      // Predicated region
      $region9: #{tpu_custom_call.1} parent=5 // pred_check
        _
      $region10: #{tpu_custom_call.1} parent=5 // pred_check_branch
        %124 = sbr.rel (%p121) target = $region12
      $region11: #{tpu_custom_call.1} parent=5 // pred_region
        %s125 = ssub.s32 %s17, 1
      $region12: #{tpu_custom_call.1} parent=5 // pred_fallthru
        _
      %p126 = scmp.lt.s32.totalorder %s17, 2
      // Predicated region
      $region13: #{tpu_custom_call.1} parent=5 // pred_check
        %p127 = pneg %p126
      $region14: #{tpu_custom_call.1} parent=5 // pred_check_branch
        %129 = sbr.rel (%p127) target = $region16
      $region15: #{tpu_custom_call.1} parent=5 // pred_region
        // Predicated region
        $region17: #{tpu_custom_call.1} parent=15 // pred_check
          %p130 = pneg %p51
        $region18: #{tpu_custom_call.1} parent=15 // pred_check_branch
          %132 = sbr.rel (%p130) target = $region20
        $region19: #{tpu_custom_call.1} parent=15 // pred_region
          %s133 = sand.u32 %s41, 1
          %s134 = scalar_lea.sflag [#allocation4], %s133
          %s135 = sand.u32 %s41, 1
          %s136 = smul.addr %s135, 8
          %s137 = scalar_lea.vmem [#allocation3], %s136
          %s139 = ssub.s32 128, 128
          %140 = vsyncadd %s134, %s139
          %s141 = sadd.s32 %s25, %s24
          %s142 = smul.addr %s141, 128
          %s143 = scalar_lea.hbm %s0, %s142
          %s145 = sshll.u32 %s137, 4
          %s146 = int_to_ptr.vmem [resolvable:$true] %s145
          %148 = dma.hbm_to_vmem [thread:$0]  %s143, 128, %s146, %s134
        $region20: #{tpu_custom_call.1} parent=15 // pred_fallthru
          _
        // Predicated region
        $region21: #{tpu_custom_call.1} parent=15 // pred_check
          %p149 = pneg %p79
        $region22: #{tpu_custom_call.1} parent=15 // pred_check_branch
          %151 = sbr.rel (%p149) target = $region24
        $region23: #{tpu_custom_call.1} parent=15 // pred_region
          %s152 = sand.u32 %s69, 1
          %s153 = scalar_lea.sflag [#allocation7], %s152
          %s154 = sand.u32 %s69, 1
          %s155 = smul.addr %s154, 8
          %s156 = scalar_lea.vmem [#allocation6], %s155
          %s158 = ssub.s32 128, 128
          %159 = vsyncadd %s153, %s158
          %s160 = sadd.s32 %s25, %s24
          %s161 = smul.addr %s160, 128
          %s162 = scalar_lea.hbm %s1, %s161
          %s164 = sshll.u32 %s156, 4
          %s165 = int_to_ptr.vmem [resolvable:$true] %s164
          %167 = dma.hbm_to_vmem [thread:$0]  %s162, 128, %s165, %s153
        $region24: #{tpu_custom_call.1} parent=15 // pred_fallthru
          _
      $region16: #{tpu_custom_call.1} parent=5 // pred_fallthru
        _
      %p168 = scmp.le.s32.totalorder 1, %s17
      %p169 = scmp.lt.s32.totalorder %s17, 3
      %p170 = pnand %p168, %p169
      %p171 = pneg %p170
      // Predicated region
      $region25: #{tpu_custom_call.1} parent=5 // pred_check
        _
      $region26: #{tpu_custom_call.1} parent=5 // pred_check_branch
        %173 = sbr.rel (%p170) target = $region28
      $region27: #{tpu_custom_call.1} parent=5 // pred_region
        %s174 = ssub.s32 %s17, 1
        %s175 = sand.u32 %s44, 1
        %s176 = scalar_lea.sflag [#allocation4], %s175
        %s177 = sand.u32 %s44, 1
        %s178 = smul.addr %s177, 8
        %s179 = scalar_lea.vmem [#allocation3], %s178
        // Predicated region
        $region29: #{tpu_custom_call.1} parent=27 // pred_check
          %p180 = pneg %p57
        $region30: #{tpu_custom_call.1} parent=27 // pred_check_branch
          %182 = sbr.rel (%p180) target = $region32
        $region31: #{tpu_custom_call.1} parent=27 // pred_region
          %183 = dma.done %s176, 128
        $region32: #{tpu_custom_call.1} parent=27 // pred_fallthru
          _
        %s184 = sand.u32 %s72, 1
        %s185 = scalar_lea.sflag [#allocation7], %s184
        %s186 = sand.u32 %s72, 1
        %s187 = smul.addr %s186, 8
        %s188 = scalar_lea.vmem [#allocation6], %s187
        // Predicated region
        $region33: #{tpu_custom_call.1} parent=27 // pred_check
          %p189 = pneg %p85
        $region34: #{tpu_custom_call.1} parent=27 // pred_check_branch
          %191 = sbr.rel (%p189) target = $region36
        $region35: #{tpu_custom_call.1} parent=27 // pred_region
          %192 = dma.done %s185, 128
        $region36: #{tpu_custom_call.1} parent=27 // pred_fallthru
          _
        %s193 = sand.u32 %s44, 1
        %s194 = scalar_lea.sflag [#allocation4], %s193
        %s195 = sand.u32 %s44, 1
        %s196 = smul.addr %s195, 8
        %s197 = scalar_lea.vmem [#allocation3], %s196
        %p198 = pneg %p57
        %p199 = pneg %p54
        %s200 = sand.u32 %s72, 1
        %s201 = scalar_lea.sflag [#allocation7], %s200
        %s202 = sand.u32 %s72, 1
        %s203 = smul.addr %s202, 8
        %s204 = scalar_lea.vmem [#allocation6], %s203
        %p205 = pneg %p85
        %p206 = pneg %p82
        %p207 = pneg %p111
        %p208 = pneg %p108
        %s209 = sand.u32 %s98, 1
        %s210 = scalar_lea.sflag [#allocation5], %s209
        %s211 = sand.u32 %s98, 1
        %s212 = scalar_lea.vmem [#allocation8], %s211
        %p213 = scmp.eq.s32.totalorder %s27, 0
        // Predicated region
        $region37: #{tpu_custom_call.1} parent=27 // pred_check
          %p214 = pneg %p213
        $region38: #{tpu_custom_call.1} parent=27 // pred_check_branch
          %216 = sbr.rel (%p214) target = $region40
        $region39: #{tpu_custom_call.1} parent=27 // pred_region
          %217 = vst [vmem:[#allocation2] sm:$0xff] 0.0
          %218 = vst [vmem:[#allocation2 + $0x8] sm:$0xff] 0.0
          %219 = vst [vmem:[#allocation2 + $0x10] sm:$0xff] 0.0
          %220 = vst [vmem:[#allocation2 + $0x18] sm:$0xff] 0.0
          %221 = vst [vmem:[#allocation2 + $0x20] sm:$0xff] 0.0
        $region40: #{tpu_custom_call.1} parent=27 // pred_fallthru
          _
        %v222 = vld [vmem:[%s179] sm:$0xff]
        %v223 = vld [vmem:[%s188] sm:$0xff]
        %v224 = vld [vmem:[#allocation2] sm:$0xff]
        %v225 = vadd.f32 %v224, %v222
        %226 = vst [vmem:[#allocation2] sm:$0xff] %v225
        %s227 = scalar_lea.vmem [#allocation2], 8
        %v228 = vld [vmem:[%s227] sm:$0xff]
        %v229 = vadd.f32 %v228, %v223
        %230 = vst [vmem:[%s227] sm:$0xff] %v229
        %s231 = scalar_lea.vmem [#allocation2], 16
        %v232 = vld [vmem:[%s231] sm:$0xff]
        %v233 = vmul.f32 %v222, %v222
        %v234 = vadd.f32 %v232, %v233
        %235 = vst [vmem:[%s231] sm:$0xff] %v234
        %s236 = scalar_lea.vmem [#allocation2], 24
        %v237 = vld [vmem:[%s236] sm:$0xff]
        %v238 = vmul.f32 %v223, %v223
        %v239 = vadd.f32 %v237, %v238
        %240 = vst [vmem:[%s236] sm:$0xff] %v239
        %s241 = scalar_lea.vmem [#allocation2], 32
        %v242 = vld [vmem:[%s241] sm:$0xff]
        %v243 = vmul.f32 %v222, %v223
        %v244 = vadd.f32 %v242, %v243
        %245 = vst [vmem:[%s241] sm:$0xff] %v244
        // Predicated region
        $region41: #{tpu_custom_call.1} parent=27 // pred_check
          %p246 = pneg %p213
        $region42: #{tpu_custom_call.1} parent=27 // pred_check_branch
          %248 = sbr.rel (%p246) target = $region44
        $region43: #{tpu_custom_call.1} parent=27 // pred_region
          %v249 = vld [vmem:[#allocation2] sm:$0xff]
          %250 = vadd.xlane.f32.xlu0 %v249
          %v251 = vpop.xlane.xlu0 %250
          %v252 = vrot.slane %v251, 4
          %v253 = vadd.f32 %v251, %v252
          %v254 = vrot.slane %v253, 2
          %v255 = vadd.f32 %v253, %v254
          %v256 = vrot.slane %v255, 1
          %v257 = vadd.f32 %v255, %v256
          %s258 = vtos %v257
          %v259 = vld [vmem:[%s227] sm:$0xff]
          %260 = vadd.xlane.f32.xlu0 %v259
          %v261 = vpop.xlane.xlu0 %260
          %v262 = vrot.slane %v261, 4
          %v263 = vadd.f32 %v261, %v262
          %v264 = vrot.slane %v263, 2
          %v265 = vadd.f32 %v263, %v264
          %v266 = vrot.slane %v265, 1
          %v267 = vadd.f32 %v265, %v266
          %s268 = vtos %v267
          %v269 = vld [vmem:[%s231] sm:$0xff]
          %270 = vadd.xlane.f32.xlu0 %v269
          %v271 = vpop.xlane.xlu0 %270
          %v272 = vrot.slane %v271, 4
          %v273 = vadd.f32 %v271, %v272
          %v274 = vrot.slane %v273, 2
          %v275 = vadd.f32 %v273, %v274
          %v276 = vrot.slane %v275, 1
          %v277 = vadd.f32 %v275, %v276
          %s278 = vtos %v277
          %v279 = vld [vmem:[%s236] sm:$0xff]
          %280 = vadd.xlane.f32.xlu0 %v279
          %v281 = vpop.xlane.xlu0 %280
          %v282 = vrot.slane %v281, 4
          %v283 = vadd.f32 %v281, %v282
          %v284 = vrot.slane %v283, 2
          %v285 = vadd.f32 %v283, %v284
          %v286 = vrot.slane %v285, 1
          %v287 = vadd.f32 %v285, %v286
          %s288 = vtos %v287
          %v289 = vld [vmem:[%s241] sm:$0xff]
          %290 = vadd.xlane.f32.xlu0 %v289
          %v291 = vpop.xlane.xlu0 %290
          %v292 = vrot.slane %v291, 4
          %v293 = vadd.f32 %v291, %v292
          %v294 = vrot.slane %v293, 2
          %v295 = vadd.f32 %v293, %v294
          %v296 = vrot.slane %v295, 1
          %v297 = vadd.f32 %v295, %v296
          %s298 = vtos %v297
          %s299 = smul.f32 %s258, 0.0009765625
          %s300 = smul.f32 %s268, 0.0009765625
          %s301 = smul.f32 %s299, 1024.0
          %s302 = smul.f32 %s301, %s299
          %s303 = ssub.f32 %s278, %s302
          %v304 = vrcp.pop 1023.0
          %s305 = vtos %v304
          %s306 = smul.f32 %s303, %s305
          %s307 = smul.f32 %s300, 1024.0
          %s308 = smul.f32 %s307, %s300
          %s309 = ssub.f32 %s288, %s308
          %v310 = vrcp.pop 1023.0
          %s311 = vtos %v310
          %s312 = smul.f32 %s309, %s311
          %s313 = smax.f32 %s306, 0.0
          %v314 = vstv %s313
          %v315 = vrsqrt.pop %v314
          %v316 = vmul.f32 %v314, %v315
          %vm317 = vcmp.eq.f32.partialorder %v314, inf
          %v318 = vsel %vm317, %v314, %v316
          %vm319 = vcmp.eq.f32.partialorder %v314, 0.0
          %v320 = vand.u32 %v314, 2147483648
          %v321 = vsel %vm319, %v320, %v318
          %s322 = vtos %v321
          %s323 = smax.f32 %s312, 0.0
          %v324 = vstv %s323
          %v325 = vrsqrt.pop %v324
          %v326 = vmul.f32 %v324, %v325
          %vm327 = vcmp.eq.f32.partialorder %v324, inf
          %v328 = vsel %vm327, %v324, %v326
          %vm329 = vcmp.eq.f32.partialorder %v324, 0.0
          %v330 = vand.u32 %v324, 2147483648
          %v331 = vsel %vm329, %v330, %v328
          %s332 = vtos %v331
          %s333 = smul.f32 %s301, %s300
          %s334 = ssub.f32 %s298, %s333
          %s335 = smul.f32 %s334, 0.0009765625
          %s336 = sadd.f32 %s322, 0.0001
          %s337 = sadd.f32 %s332, 0.0001
          %s338 = smul.f32 %s336, %s337
          %v339 = vstv %s338
          %v340 = vrcp.pop %v339
          %s341 = vtos %v340
          %s342 = smul.f32 %s335, %s341
          %v343 = vstv %s342
          %344 = vst [vmem:[%s212] sm:$0x1] %v343
        $region44: #{tpu_custom_call.1} parent=27 // pred_fallthru
          _
        %s345 = sand.u32 %s98, 1
        %s346 = scalar_lea.sflag [#allocation5], %s345
        %s347 = sand.u32 %s98, 1
        %s348 = scalar_lea.vmem [#allocation8], %s347
        // Predicated region
        $region45: #{tpu_custom_call.1} parent=27 // pred_check
          %p349 = pneg %p108
        $region46: #{tpu_custom_call.1} parent=27 // pred_check_branch
          %351 = sbr.rel (%p349) target = $region48
        $region47: #{tpu_custom_call.1} parent=27 // pred_region
          %s353 = ssub.s32 16, 16
          %354 = vsyncadd %s346, %s353
          %s355 = smul.addr %s26, 16
          %s356 = scalar_lea.hbm %s2, %s355
          %s358 = sshll.u32 %s348, 4
          %s359 = int_to_ptr.vmem [resolvable:$true] %s358
          %361 = dma.vmem_to_hbm [thread:$0]  %s359, 16, %s356, %s346
        $region48: #{tpu_custom_call.1} parent=27 // pred_fallthru
          _
      $region28: #{tpu_custom_call.1} parent=5 // pred_fallthru
        _
      %p362 = scmp.le.s32.totalorder 2, %s17
      // Predicated region
      $region49: #{tpu_custom_call.1} parent=5 // pred_check
        %p363 = pneg %p362
      $region50: #{tpu_custom_call.1} parent=5 // pred_check_branch
        %365 = sbr.rel (%p363) target = $region52
      $region51: #{tpu_custom_call.1} parent=5 // pred_region
        %s366 = ssub.s32 %s17, 2
        // Predicated region
        $region53: #{tpu_custom_call.1} parent=51 // pred_check
          %p367 = pneg %p114
        $region54: #{tpu_custom_call.1} parent=51 // pred_check_branch
          %369 = sbr.rel (%p367) target = $region56
        $region55: #{tpu_custom_call.1} parent=51 // pred_region
          %s370 = sand.u32 %s99, 1
          %s371 = scalar_lea.sflag [#allocation5], %s370
          %s372 = sand.u32 %s99, 1
          %s373 = scalar_lea.vmem [#allocation8], %s372
          %374 = dma.done %s371, 16
        $region56: #{tpu_custom_call.1} parent=51 // pred_fallthru
          _
      $region52: #{tpu_custom_call.1} parent=5 // pred_fallthru
        _
    $region6: #{tpu_custom_call.1} parent=1 // loop_footer
      %s21 = sadd.s32 1, %s17
    $region7: #{tpu_custom_call.1} parent=1 // loop_footer_branch
      %16 = sbr.rel target = $region3
    $region8: #{tpu_custom_call.1} parent=1 // loop_exit
      _
    %375 = vsyncpa [#allocation4], 1
    %s376 = scalar_lea.sflag [#allocation4], 1
    %377 = vsyncpa %s376, 1
    %378 = vsyncpa [#allocation7], 1
    %s379 = scalar_lea.sflag [#allocation7], 1
    %380 = vsyncpa %s379, 1
    %381 = vsyncpa [#allocation5], 1
    %s382 = scalar_lea.sflag [#allocation5], 1
    %383 = vsyncpa %s382, 1

</llo_original>
